<compile_context>
chip_gen: v5e
topology: v5e:2x2
jax: 0.10.0
libtpu: 0.0.40
codegen_flags: <defaults>
</compile_context>

<pallas_src>
import numpy as np

import jax
import jax.numpy as jnp
from jax.experimental import pallas as pl
from jax.experimental.pallas import tpu as pltpu

_UNROLL = 8            # swept {4, 8, 16}; 8 keeps live vb/wb/b* per face modest
_BIN_MARGIN = 1e-4     # UV-space safety margin for the y-extent binning


# ----------------------------------------------------------------------------
# Wrapper-side precomputation
# ----------------------------------------------------------------------------
def _face_coefficients(uv, face_indices):
    """Affine barycentric coefficients per face: vb = Av*px + Bv*py + Cv, etc."""
    faces = face_indices.astype(jnp.int32)
    tri = uv.astype(jnp.float32)[faces]          # [F, 3, 2]
    a, b, c = tri[:, 0], tri[:, 1], tri[:, 2]    # [F, 2]
    v0 = b - a
    v1 = c - a
    d00 = jnp.sum(v0 * v0, axis=-1)
    d01 = jnp.sum(v0 * v1, axis=-1)
    d11 = jnp.sum(v1 * v1, axis=-1)
    denom = d00 * d11 - d01 * d01
    # Relative degeneracy test (denom scales like UV-area^2).
    ok = jnp.abs(denom) > 1e-10 * jnp.maximum(d00 * d11, jnp.float32(1e-30))
    inv = jnp.where(ok, 1.0 / jnp.where(ok, denom, 1.0), 0.0)
    av = (d11 * v0[:, 0] - d01 * v1[:, 0]) * inv
    bv = (d11 * v0[:, 1] - d01 * v1[:, 1]) * inv
    aw = (d00 * v1[:, 0] - d01 * v0[:, 0]) * inv
    bw = (d00 * v1[:, 1] - d01 * v0[:, 1]) * inv
    # Degenerate faces: A/B coeffs are 0 (inv = 0); force C = -1 so the face is
    # never "inside".
    cv = jnp.where(ok, -(av * a[:, 0] + bv * a[:, 1]), -1.0)
    cw = jnp.where(ok, -(aw * a[:, 0] + bw * a[:, 1]), -1.0)
    return av, bv, cv, aw, bw, cw


def _pick_row_tile(res, planes):
    """Largest row tile (multiple of 8, divides res, even #tiles) in budget."""
    if res % 8 != 0:
        return res                       # single full block
    try:
        vmem_bytes = int(pltpu.get_tpu_info().vmem_capacity_bytes)
    except Exception:
        vmem_bytes = 64 * 1024 * 1024    # conservative (v7x per-TC) fallback
    budget = max(4 * 1024 * 1024, vmem_bytes // 6)
    th = budget // max(1, planes * res * 4)
    th = max(8, min((th // 8) * 8, res))
    # Keep an EVEN number (>= 2) of row tiles when possible so v7x's two
    # TensorCores split the "parallel" axis evenly; negligible cost on 1-TC
    # v5e/v6e (and binning shrinks the per-step fixed cost anyway).
    cap = (res // 2) // 8 * 8
    if cap >= 8:
        th = min(th, cap)
    while th >= 8 and (res % th != 0 or (res // th) % 2 != 0):
        th -= 8
    if th < 8:
        return res
    return th


def _bin_faces_by_row_tile(uv, face_indices, res, th, unroll):
    """Host-side binning of faces into per-row-tile buckets by UV y-extent.

    Returns (binned_idx [T] int32, info [2, n_tiles] int32) where binned_idx
    indexes columns of the (rows, F+1) face table (column F = dummy face that
    never covers any texel), each bucket is padded to a multiple of `unroll`,
    info[0] = bucket start offset, info[1] = number of unrolled fori steps.
    """
    uv_np = np.asarray(jax.device_get(uv), dtype=np.float64)
    f_np = np.asarray(jax.device_get(face_indices)).astype(np.int64)
    nf = f_np.shape[0]
    n_tiles = res // th

    if nf > 0:
        tri_v = uv_np[f_np][:, :, 1]                      # [F, 3]
        fmin = tri_v.min(axis=1) - _BIN_MARGIN
        fmax = tri_v.max(axis=1) + _BIN_MARGIN
    else:
        fmin = np.zeros((0,)); fmax = np.zeros((0,))

    iy0 = np.arange(n_tiles, dtype=np.float64) * th
    py_hi = 1.0 - (iy0 + 0.5) / res                       # largest py in tile
    py_lo = 1.0 - (iy0 + th - 0.5) / res                  # smallest py in tile
    overlap = (fmin[None, :] <= py_hi[:, None]) & (fmax[None, :] >= py_lo[:, None])

    chunks, offsets, nsteps = [], [], []
    off = 0
    for t in range(n_tiles):
        idx = np.nonzero(overlap[t])[0].astype(np.int32)  # ascending face index
        cnt = idx.shape[0]
        padded = ((cnt + unroll - 1) // unroll) * unroll
        chunk = np.full((padded,), nf, np.int32)          # dummy column index
        chunk[:cnt] = idx
        chunks.append(chunk)
        offsets.append(off)
        nsteps.append(padded // unroll)
        off += padded
    if off == 0:                                          # no faces anywhere
        chunks = [np.full((unroll,), nf, np.int32)]
    binned = np.concatenate(chunks).astype(np.int32)
    info = np.stack([np.asarray(offsets, np.int32),
                     np.asarray(nsteps, np.int32)], axis=0)
    return jnp.asarray(binned), jnp.asarray(info)


# ----------------------------------------------------------------------------
# Kernels
# ----------------------------------------------------------------------------
def _texel_coords(th, res):
    row0 = pl.program_id(0) * th
    iy = (jax.lax.broadcasted_iota(jnp.int32, (th, res), 0) + row0).astype(jnp.float32)
    ix = jax.lax.broadcasted_iota(jnp.int32, (th, res), 1).astype(jnp.float32)
    inv_res = jnp.float32(1.0 / res)
    px = (ix + 0.5) * inv_res
    # TODO(synk): the reference DLL's exact pixel-center / v-flip convention is
    # not recoverable from the Python source; we assume v is flipped (v up).
    py = 1.0 - (iy + 0.5) * inv_res
    return px, py


def _fused_bake_kernel(info_ref, tab_ref, out_ref):
    # info_ref: SMEM (2, n_tiles)  rows = (bucket offset, n fori steps)
    # tab_ref : SMEM (15, T) rows = (Av,Bv,Cv,Aw,Bw,Cw, A0..A2, dB0..2, dC0..2)
    # out_ref : VMEM (3, TH, R) texture planes
    th, res = out_ref.shape[1], out_ref.shape[2]
    i = pl.program_id(0)
    off = info_ref[0, i]
    nsteps = info_ref[1, i]
    px, py = _texel_coords(th, res)
    zeros = jnp.zeros((th, res), jnp.float32)

    def body(s, carry):
        c0, c1, c2 = carry
        # Reverse order: last-write-wins == lowest-index covering face, so no
        # `done` carry / guard is needed.
        base = off + (nsteps - 1 - s) * _UNROLL
        for k in range(_UNROLL - 1, -1, -1):
            f = base + k
            vb = tab_ref[0, f] * px + tab_ref[1, f] * py + tab_ref[2, f]
            wb = tab_ref[3, f] * px + tab_ref[4, f] * py + tab_ref[5, f]
            inside = jnp.minimum(jnp.minimum(vb, wb), 1.0 - (vb + wb)) >= 0.0
            b0 = tab_ref[6, f] + vb * tab_ref[9, f] + wb * tab_ref[12, f]
            b1 = tab_ref[7, f] + vb * tab_ref[10, f] + wb * tab_ref[13, f]
            b2 = tab_ref[8, f] + vb * tab_ref[11, f] + wb * tab_ref[14, f]
            c0 = jnp.where(inside, b0, c0)
            c1 = jnp.where(inside, b1, c1)
            c2 = jnp.where(inside, b2, c2)
        return c0, c1, c2

    # TODO(synk): if v5e bundle dumps show the single vst slot binding on the
    # carry writebacks, restructure with column sub-chunks so carries stay
    # register-resident across the face loop.
    c0, c1, c2 = jax.lax.fori_loop(0, nsteps, body, (zeros, zeros, zeros))
    out_ref[0] = c0
    out_ref[1] = c1
    out_ref[2] = c2


def _rasterize_kernel(info_ref, tab_ref, rast_ref):
    # tab_ref : SMEM (7, T) rows = (Av, Bv, Cv, Aw, Bw, Cw, face_id_f32)
    # rast_ref: VMEM (4, TH, R) = (bary_u, bary_v, bary_w, face_id) planes
    th, res = rast_ref.shape[1], rast_ref.shape[2]
    i = pl.program_id(0)
    off = info_ref[0, i]
    nsteps = info_ref[1, i]
    px, py = _texel_coords(th, res)
    zf = jnp.zeros((th, res), jnp.float32)
    fid0 = jnp.full((th, res), -1.0, jnp.float32)

    def body(s, carry):
        v_acc, w_acc, fid = carry
        base = off + (nsteps - 1 - s) * _UNROLL
        for k in range(_UNROLL - 1, -1, -1):
            f = base + k
            vb = tab_ref[0, f] * px + tab_ref[1, f] * py + tab_ref[2, f]
            wb = tab_ref[3, f] * px + tab_ref[4, f] * py + tab_ref[5, f]
            inside = jnp.minimum(jnp.minimum(vb, wb), 1.0 - (vb + wb)) >= 0.0
            v_acc = jnp.where(inside, vb, v_acc)
            w_acc = jnp.where(inside, wb, w_acc)
            fid = jnp.where(inside, tab_ref[6, f], fid)
        return v_acc, w_acc, fid

    v_acc, w_acc, fid = jax.lax.fori_loop(0, nsteps, body, (zf, zf, fid0))
    covered = fid >= 0.0
    rast_ref[0] = jnp.where(covered, 1.0 - (v_acc + w_acc), 0.0)
    rast_ref[1] = v_acc
    rast_ref[2] = w_acc
    # TODO(synk): face id carried as f32 in the rast map (DLL layout); exact
    # only up to 2^24 faces.
    rast_ref[3] = fid


def _blend_kernel(rast_ref, attr_ref, out_ref):
    # rast_ref: VMEM (4, TH, R); attr_ref: VMEM (9, TH, R) per-texel gathered
    # vertex attributes (A0,A1,A2,B0,B1,B2,C0,C1,C2); out_ref: VMEM (3, TH, R)
    u = rast_ref[0]
    v = rast_ref[1]
    w = rast_ref[2]
    out_ref[0] = u * attr_ref[0] + v * attr_ref[3] + w * attr_ref[6]
    out_ref[1] = u * attr_ref[1] + v * attr_ref[4] + w * attr_ref[7]
    out_ref[2] = u * attr_ref[2] + v * attr_ref[5] + w * attr_ref[8]


# ----------------------------------------------------------------------------
# Public module
# ----------------------------------------------------------------------------
class TextureBaker:
    """JAX/Pallas reimplementation of sf3d.texture_baker.TextureBaker."""

    def rasterize(self, uv, face_indices, bake_resolution, device=None):
        res = int(bake_resolution)
        faces = face_indices.astype(jnp.int32)
        nf = int(faces.shape[0])
        av, bv, cv, aw, bw, cw = _face_coefficients(uv, faces)
        fidf = jnp.arange(nf, dtype=jnp.float32)
        table = jnp.stack([av, bv, cv, aw, bw, cw, fidf], axis=0)        # (7, F)
        dummy = jnp.array([0.0, 0.0, -1.0, 0.0, 0.0, -1.0, -1.0],
                          jnp.float32)[:, None]
        table = jnp.concatenate([table, dummy], axis=1)                  # (7, F+1)

        th = _pick_row_tile(res, planes=16)
        binned_idx, info = _bin_faces_by_row_tile(uv, faces, res, th, _UNROLL)
        table_b = jnp.take(table, binned_idx, axis=1)                    # (7, T)
        total = int(binned_idx.shape[0])

        rast_cf = pl.pallas_call(
            _rasterize_kernel,
            out_shape=jax.ShapeDtypeStruct((4, res, res), jnp.float32),
            grid=(res // th,),
            in_specs=[pl.BlockSpec(memory_space=pltpu.MemorySpace.SMEM),
                      pl.BlockSpec(memory_space=pltpu.MemorySpace.SMEM)],
            out_specs=pl.BlockSpec((4, th, res), lambda i: (0, i, 0)),
            compiler_params=pltpu.CompilerParams(
                dimension_semantics=("parallel",)),
            cost_estimate=pl.CostEstimate(
                flops=total * th * res * 14, transcendentals=0,
                bytes_accessed=4 * res * res * 4 + int(table_b.size) * 4),
        )(info, table_b)
        return jnp.transpose(rast_cf, (1, 2, 0))          # [R, R, 4]

    def get_mask(self, rast):
        return rast[..., -1] >= 0

    def interpolate(self, attr, rast, face_indices, bake_resolution, device=None):
        res = int(bake_resolution)
        faces = face_indices.astype(jnp.int32)
        nf = int(faces.shape[0])
        fattr = attr.astype(jnp.float32)[faces]            # [F, 3, 3]
        table9 = jnp.concatenate(
            [fattr.reshape(nf, 9), jnp.zeros((1, 9), jnp.float32)], axis=0)

        rastf = rast.astype(jnp.float32)
        fid = rastf[..., 3].astype(jnp.int32)
        idx = jnp.where(fid < 0, nf, fid)                  # uncovered -> zero row
        # Channel-wise gathers keep the result channel-first (lane-dense),
        # avoiding a full-image [R,R,9] -> [9,R,R] transpose.
        attrs_cf = jnp.stack([jnp.take(table9[:, c], idx) for c in range(9)],
                             axis=0)                       # [9, R, R]
        rast_cf = jnp.transpose(rastf, (2, 0, 1))          # [4, R, R]

        th = _pick_row_tile(res, planes=32)
        tex_cf = pl.pallas_call(
            _blend_kernel,
            out_shape=jax.ShapeDtypeStruct((3, res, res), jnp.float32),
            grid=(res // th,),
            in_specs=[pl.BlockSpec((4, th, res), lambda i: (0, i, 0)),
                      pl.BlockSpec((9, th, res), lambda i: (0, i, 0))],
            out_specs=pl.BlockSpec((3, th, res), lambda i: (0, i, 0)),
            compiler_params=pltpu.CompilerParams(
                dimension_semantics=("parallel",)),
            cost_estimate=pl.CostEstimate(
                flops=res * res * 15, transcendentals=0,
                bytes_accessed=16 * res * res * 4),
        )(rast_cf, attrs_cf)
        return jnp.transpose(tex_cf, (1, 2, 0))            # [R, R, 3]

    def __call__(self, attr, uv, face_indices, bake_resolution, device=None):
        # Fused rasterize + interpolate: no rast HBM round trip, no transposes
        # between the two stages.
        res = int(bake_resolution)
        faces = face_indices.astype(jnp.int32)
        av, bv, cv, aw, bw, cw = _face_coefficients(uv, faces)
        fattr = attr.astype(jnp.float32)[faces]            # [F, 3, 3]
        base = fattr[:, 0, :]                              # vertex-A attributes
        d_b = fattr[:, 1, :] - base
        d_c = fattr[:, 2, :] - base
        table = jnp.stack(
            [av, bv, cv, aw, bw, cw,
             base[:, 0], base[:, 1], base[:, 2],
             d_b[:, 0], d_b[:, 1], d_b[:, 2],
             d_c[:, 0], d_c[:, 1], d_c[:, 2]], axis=0)     # (15, F)
        dummy = jnp.zeros((15, 1), jnp.float32).at[2, 0].set(-1.0).at[5, 0].set(-1.0)
        table = jnp.concatenate([table, dummy], axis=1)    # (15, F+1)

        th = _pick_row_tile(res, planes=14)
        binned_idx, info = _bin_faces_by_row_tile(uv, faces, res, th, _UNROLL)
        table_b = jnp.take(table, binned_idx, axis=1)      # (15, T)
        total = int(binned_idx.shape[0])

        tex_cf = pl.pallas_call(
            _fused_bake_kernel,
            out_shape=jax.ShapeDtypeStruct((3, res, res), jnp.float32),
            grid=(res // th,),
            in_specs=[pl.BlockSpec(memory_space=pltpu.MemorySpace.SMEM),
                      pl.BlockSpec(memory_space=pltpu.MemorySpace.SMEM)],
            out_specs=pl.BlockSpec((3, th, res), lambda i: (0, i, 0)),
            compiler_params=pltpu.CompilerParams(
                dimension_semantics=("parallel",)),
            cost_estimate=pl.CostEstimate(
                flops=total * th * res * 22, transcendentals=0,
                bytes_accessed=3 * res * res * 4 + int(table_b.size) * 4),
        )(info, table_b)
        return jnp.transpose(tex_cf, (1, 2, 0))            # [R, R, 3]


# ----------------------------------------------------------------------------
# Pure-JAX reference (same conventions / same precomputed coefficients)
# ----------------------------------------------------------------------------
def _reference_bake(attr, uv, faces, res):
    faces = faces.astype(jnp.int32)
    av, bv, cv, aw, bw, cw = _face_coefficients(uv, faces)
    iy, ix = jnp.meshgrid(jnp.arange(res, dtype=jnp.float32),
                          jnp.arange(res, dtype=jnp.float32), indexing="ij")
    inv_res = jnp.float32(1.0 / res)
    px = (ix + 0.5) * inv_res
    py = 1.0 - (iy + 0.5) * inv_res
    vb = av * px[..., None] + bv * py[..., None] + cv      # [R, R, F]
    wb = aw * px[..., None] + bw * py[..., None] + cw
    ub = 1.0 - (vb + wb)
    inside = (vb >= 0.0) & (wb >= 0.0) & (ub >= 0.0)
    first = jnp.argmax(inside, axis=-1)                    # lowest index wins
    anyhit = jnp.any(inside, axis=-1)
    take = lambda x: jnp.take_along_axis(x, first[..., None], -1)[..., 0]
    u, v, w = take(ub), take(vb), take(wb)
    fattr = attr.astype(jnp.float32)[faces]                # [F, 3, 3]
    fa = fattr[first]                                      # [R, R, 3, 3]
    tex = (u[..., None] * fa[..., 0, :]
           + v[..., None] * fa[..., 1, :]
           + w[..., None] * fa[..., 2, :])
    return jnp.where(anyhit[..., None], tex, 0.0), anyhit


def _grid_mesh(n):
    """Small well-conditioned triangulated grid strictly inside the UV square."""
    lin = jnp.linspace(0.06, 0.94, n + 1, dtype=jnp.float32)
    vu, vv = jnp.meshgrid(lin, lin, indexing="ij")
    uv = jnp.stack([vu.reshape(-1), vv.reshape(-1)], axis=-1)
    idx = jnp.arange((n + 1) * (n + 1), dtype=jnp.int32).reshape(n + 1, n + 1)
    v00 = idx[:-1, :-1].reshape(-1)
    v01 = idx[:-1, 1:].reshape(-1)
    v10 = idx[1:, :-1].reshape(-1)
    v11 = idx[1:, 1:].reshape(-1)
    f0 = jnp.stack([v00, v10, v11], axis=-1)
    f1 = jnp.stack([v00, v11, v01], axis=-1)
    faces = jnp.concatenate([f0, f1], axis=0).astype(jnp.int32)
    return uv, faces


if __name__ == "__main__":
    key = jax.random.PRNGKey(0)
    bake_resolution = 16
    uv, face_indices = _grid_mesh(3)                       # 16 vertices, 18 faces
    attr = jax.random.normal(key, (uv.shape[0], 3), dtype=jnp.float32)

    baker = TextureBaker()
    rast = jax.block_until_ready(baker.rasterize(uv, face_indices, bake_resolution))
    mask = jax.block_until_ready(baker.get_mask(rast))
    tex_sep = jax.block_until_ready(
        baker.interpolate(attr, rast, face_indices, bake_resolution))
    tex_fused = jax.block_until_ready(baker(attr, uv, face_indices, bake_resolution))

    assert rast.shape == (bake_resolution, bake_resolution, 4)
    assert mask.shape == (bake_resolution, bake_resolution) and mask.dtype == jnp.bool_
    assert tex_sep.shape == (bake_resolution, bake_resolution, 3)
    assert tex_fused.shape == (bake_resolution, bake_resolution, 3)

    ref_tex, ref_mask = _reference_bake(attr, uv, face_indices, bake_resolution)
    assert bool(jnp.all(mask == ref_mask)), "mask mismatch vs reference"
    assert jnp.allclose(tex_sep, ref_tex, rtol=1e-4, atol=1e-4), \
        "rasterize+interpolate mismatch vs reference"
    assert jnp.allclose(tex_fused, ref_tex, rtol=1e-4, atol=1e-4), \
        "fused bake mismatch vs reference"

    print("KERNEL_OK")
</pallas_src>

<mosaic_0001>
module attributes {stable_mosaic.version = 11 : i64} {
  func.func @_rasterize_kernel(%arg0: i32, %arg1: memref<2x2xi32, #tpu.memory_space<smem>>, %arg2: memref<7x32xf32, #tpu.memory_space<smem>>, %arg3: memref<4x8x16xf32, #tpu.memory_space<vmem>>) attributes {dimension_semantics = [#tpu.dimension_semantics<parallel>], iteration_bounds = array<i64: 2>, scalar_prefetch = 0 : i64, scratch_operands = 0 : i64, tpu.core_type = #tpu.core_type<tc>, window_params = [{transform_indices = @transform_0, window_bounds = array<i64: 2, 2>}, {transform_indices = @transform_1, window_bounds = array<i64: 7, 32>}, {transform_indices = @transform_2, window_bounds = array<i64: 4, 8, 16>}]} {
    %c0 = arith.constant 0 : index
    %0 = arith.index_cast %arg0 : i32 to index
    %1 = memref.load %arg1[%c0, %0] : memref<2x2xi32, #tpu.memory_space<smem>>
    %c1 = arith.constant 1 : index
    %2 = arith.index_cast %arg0 : i32 to index
    %3 = memref.load %arg1[%c1, %2] : memref<2x2xi32, #tpu.memory_space<smem>>
    %c8_i32 = arith.constant 8 : i32
    %4 = arith.muli %arg0, %c8_i32 : i32
    %5 = tpu.iota {dimensions = array<i32: 0>} : vector<8x16xi32>
    %6 = vector.broadcast %4 : i32 to vector<8x16xi32>
    %7 = arith.addi %5, %6 : vector<8x16xi32>
    %8 = arith.sitofp %7 : vector<8x16xi32> to vector<8x16xf32>
    %9 = tpu.iota {dimensions = array<i32: 1>} : vector<8x16xi32>
    %10 = arith.sitofp %9 : vector<8x16xi32> to vector<8x16xf32>
    %cst = arith.constant 5.000000e-01 : f32
    %11 = vector.broadcast %cst : f32 to vector<8x16xf32>
    %12 = arith.addf %10, %11 : vector<8x16xf32>
    %cst_0 = arith.constant 6.250000e-02 : f32
    %13 = vector.broadcast %cst_0 : f32 to vector<8x16xf32>
    %14 = arith.mulf %12, %13 : vector<8x16xf32>
    %cst_1 = arith.constant 5.000000e-01 : f32
    %15 = vector.broadcast %cst_1 : f32 to vector<8x16xf32>
    %16 = arith.addf %8, %15 : vector<8x16xf32>
    %cst_2 = arith.constant 6.250000e-02 : f32
    %17 = vector.broadcast %cst_2 : f32 to vector<8x16xf32>
    %18 = arith.mulf %16, %17 : vector<8x16xf32>
    %cst_3 = arith.constant 1.000000e+00 : f32
    %19 = vector.broadcast %cst_3 : f32 to vector<8x16xf32>
    %20 = arith.subf %19, %18 : vector<8x16xf32>
    %cst_4 = arith.constant 0.000000e+00 : f32
    %21 = vector.broadcast %cst_4 : f32 to vector<8x16xf32>
    %cst_5 = arith.constant -1.000000e+00 : f32
    %22 = vector.broadcast %cst_5 : f32 to vector<8x16xf32>
    %c0_i32 = arith.constant 0 : i32
    %23 = arith.subi %3, %c0_i32 : i32
    %24 = arith.addi %c0_i32, %23 : i32
    %c1_i32 = arith.constant 1 : i32
    %25:3 = scf.for %arg4 = %c0_i32 to %24 step %c1_i32 iter_args(%arg5 = %21, %arg6 = %21, %arg7 = %22) -> (vector<8x16xf32>, vector<8x16xf32>, vector<8x16xf32>)  : i32 {
      %c1_i32_19 = arith.constant 1 : i32
      %45 = arith.subi %3, %c1_i32_19 : i32
      %46 = arith.subi %45, %arg4 : i32
      %c8_i32_20 = arith.constant 8 : i32
      %47 = arith.muli %46, %c8_i32_20 : i32
      %48 = arith.addi %1, %47 : i32
      %c7_i32 = arith.constant 7 : i32
      %49 = arith.addi %48, %c7_i32 : i32
      %c0_21 = arith.constant 0 : index
      %50 = arith.index_cast %49 : i32 to index
      %51 = memref.load %arg2[%c0_21, %50] : memref<7x32xf32, #tpu.memory_space<smem>>
      %52 = vector.broadcast %51 : f32 to vector<8x16xf32>
      %53 = arith.mulf %52, %14 : vector<8x16xf32>
      %c1_22 = arith.constant 1 : index
      %54 = arith.index_cast %49 : i32 to index
      %55 = memref.load %arg2[%c1_22, %54] : memref<7x32xf32, #tpu.memory_space<smem>>
      %56 = vector.broadcast %55 : f32 to vector<8x16xf32>
      %57 = arith.mulf %56, %20 : vector<8x16xf32>
      %58 = arith.addf %53, %57 : vector<8x16xf32>
      %c2_23 = arith.constant 2 : index
      %59 = arith.index_cast %49 : i32 to index
      %60 = memref.load %arg2[%c2_23, %59] : memref<7x32xf32, #tpu.memory_space<smem>>
      %61 = vector.broadcast %60 : f32 to vector<8x16xf32>
      %62 = arith.addf %58, %61 : vector<8x16xf32>
      %c3_24 = arith.constant 3 : index
      %63 = arith.index_cast %49 : i32 to index
      %64 = memref.load %arg2[%c3_24, %63] : memref<7x32xf32, #tpu.memory_space<smem>>
      %65 = vector.broadcast %64 : f32 to vector<8x16xf32>
      %66 = arith.mulf %65, %14 : vector<8x16xf32>
      %c4 = arith.constant 4 : index
      %67 = arith.index_cast %49 : i32 to index
      %68 = memref.load %arg2[%c4, %67] : memref<7x32xf32, #tpu.memory_space<smem>>
      %69 = vector.broadcast %68 : f32 to vector<8x16xf32>
      %70 = arith.mulf %69, %20 : vector<8x16xf32>
      %71 = arith.addf %66, %70 : vector<8x16xf32>
      %c5 = arith.constant 5 : index
      %72 = arith.index_cast %49 : i32 to index
      %73 = memref.load %arg2[%c5, %72] : memref<7x32xf32, #tpu.memory_space<smem>>
      %74 = vector.broadcast %73 : f32 to vector<8x16xf32>
      %75 = arith.addf %71, %74 : vector<8x16xf32>
      %76 = arith.minimumf %62, %75 : vector<8x16xf32>
      %77 = arith.addf %62, %75 : vector<8x16xf32>
      %cst_25 = arith.constant 1.000000e+00 : f32
      %78 = vector.broadcast %cst_25 : f32 to vector<8x16xf32>
      %79 = arith.subf %78, %77 : vector<8x16xf32>
      %80 = arith.minimumf %76, %79 : vector<8x16xf32>
      %cst_26 = arith.constant 0.000000e+00 : f32
      %81 = vector.broadcast %cst_26 : f32 to vector<8x16xf32>
      %82 = arith.cmpf oge, %80, %81 : vector<8x16xf32>
      %83 = arith.select %82, %62, %arg5 : vector<8x16xi1>, vector<8x16xf32>
      %84 = arith.select %82, %75, %arg6 : vector<8x16xi1>, vector<8x16xf32>
      %c6 = arith.constant 6 : index
      %85 = arith.index_cast %49 : i32 to index
      %86 = memref.load %arg2[%c6, %85] : memref<7x32xf32, #tpu.memory_space<smem>>
      %87 = vector.broadcast %86 : f32 to vector<8x16xf32>
      %88 = arith.select %82, %87, %arg7 : vector<8x16xi1>, vector<8x16xf32>
      %c6_i32 = arith.constant 6 : i32
      %89 = arith.addi %48, %c6_i32 : i32
      %c0_27 = arith.constant 0 : index
      %90 = arith.index_cast %89 : i32 to index
      %91 = memref.load %arg2[%c0_27, %90] : memref<7x32xf32, #tpu.memory_space<smem>>
      %92 = vector.broadcast %91 : f32 to vector<8x16xf32>
      %93 = arith.mulf %92, %14 : vector<8x16xf32>
      %c1_28 = arith.constant 1 : index
      %94 = arith.index_cast %89 : i32 to index
      %95 = memref.load %arg2[%c1_28, %94] : memref<7x32xf32, #tpu.memory_space<smem>>
      %96 = vector.broadcast %95 : f32 to vector<8x16xf32>
      %97 = arith.mulf %96, %20 : vector<8x16xf32>
      %98 = arith.addf %93, %97 : vector<8x16xf32>
      %c2_29 = arith.constant 2 : index
      %99 = arith.index_cast %89 : i32 to index
      %100 = memref.load %arg2[%c2_29, %99] : memref<7x32xf32, #tpu.memory_space<smem>>
      %101 = vector.broadcast %100 : f32 to vector<8x16xf32>
      %102 = arith.addf %98, %101 : vector<8x16xf32>
      %c3_30 = arith.constant 3 : index
      %103 = arith.index_cast %89 : i32 to index
      %104 = memref.load %arg2[%c3_30, %103] : memref<7x32xf32, #tpu.memory_space<smem>>
      %105 = vector.broadcast %104 : f32 to vector<8x16xf32>
      %106 = arith.mulf %105, %14 : vector<8x16xf32>
      %c4_31 = arith.constant 4 : index
      %107 = arith.index_cast %89 : i32 to index
      %108 = memref.load %arg2[%c4_31, %107] : memref<7x32xf32, #tpu.memory_space<smem>>
      %109 = vector.broadcast %108 : f32 to vector<8x16xf32>
      %110 = arith.mulf %109, %20 : vector<8x16xf32>
      %111 = arith.addf %106, %110 : vector<8x16xf32>
      %c5_32 = arith.constant 5 : index
      %112 = arith.index_cast %89 : i32 to index
      %113 = memref.load %arg2[%c5_32, %112] : memref<7x32xf32, #tpu.memory_space<smem>>
      %114 = vector.broadcast %113 : f32 to vector<8x16xf32>
      %115 = arith.addf %111, %114 : vector<8x16xf32>
      %116 = arith.minimumf %102, %115 : vector<8x16xf32>
      %117 = arith.addf %102, %115 : vector<8x16xf32>
      %cst_33 = arith.constant 1.000000e+00 : f32
      %118 = vector.broadcast %cst_33 : f32 to vector<8x16xf32>
      %119 = arith.subf %118, %117 : vector<8x16xf32>
      %120 = arith.minimumf %116, %119 : vector<8x16xf32>
      %cst_34 = arith.constant 0.000000e+00 : f32
      %121 = vector.broadcast %cst_34 : f32 to vector<8x16xf32>
      %122 = arith.cmpf oge, %120, %121 : vector<8x16xf32>
      %123 = arith.select %122, %102, %83 : vector<8x16xi1>, vector<8x16xf32>
      %124 = arith.select %122, %115, %84 : vector<8x16xi1>, vector<8x16xf32>
      %c6_35 = arith.constant 6 : index
      %125 = arith.index_cast %89 : i32 to index
      %126 = memref.load %arg2[%c6_35, %125] : memref<7x32xf32, #tpu.memory_space<smem>>
      %127 = vector.broadcast %126 : f32 to vector<8x16xf32>
      %128 = arith.select %122, %127, %88 : vector<8x16xi1>, vector<8x16xf32>
      %c5_i32 = arith.constant 5 : i32
      %129 = arith.addi %48, %c5_i32 : i32
      %c0_36 = arith.constant 0 : index
      %130 = arith.index_cast %129 : i32 to index
      %131 = memref.load %arg2[%c0_36, %130] : memref<7x32xf32, #tpu.memory_space<smem>>
      %132 = vector.broadcast %131 : f32 to vector<8x16xf32>
      %133 = arith.mulf %132, %14 : vector<8x16xf32>
      %c1_37 = arith.constant 1 : index
      %134 = arith.index_cast %129 : i32 to index
      %135 = memref.load %arg2[%c1_37, %134] : memref<7x32xf32, #tpu.memory_space<smem>>
      %136 = vector.broadcast %135 : f32 to vector<8x16xf32>
      %137 = arith.mulf %136, %20 : vector<8x16xf32>
      %138 = arith.addf %133, %137 : vector<8x16xf32>
      %c2_38 = arith.constant 2 : index
      %139 = arith.index_cast %129 : i32 to index
      %140 = memref.load %arg2[%c2_38, %139] : memref<7x32xf32, #tpu.memory_space<smem>>
      %141 = vector.broadcast %140 : f32 to vector<8x16xf32>
      %142 = arith.addf %138, %141 : vector<8x16xf32>
      %c3_39 = arith.constant 3 : index
      %143 = arith.index_cast %129 : i32 to index
      %144 = memref.load %arg2[%c3_39, %143] : memref<7x32xf32, #tpu.memory_space<smem>>
      %145 = vector.broadcast %144 : f32 to vector<8x16xf32>
      %146 = arith.mulf %145, %14 : vector<8x16xf32>
      %c4_40 = arith.constant 4 : index
      %147 = arith.index_cast %129 : i32 to index
      %148 = memref.load %arg2[%c4_40, %147] : memref<7x32xf32, #tpu.memory_space<smem>>
      %149 = vector.broadcast %148 : f32 to vector<8x16xf32>
      %150 = arith.mulf %149, %20 : vector<8x16xf32>
      %151 = arith.addf %146, %150 : vector<8x16xf32>
      %c5_41 = arith.constant 5 : index
      %152 = arith.index_cast %129 : i32 to index
      %153 = memref.load %arg2[%c5_41, %152] : memref<7x32xf32, #tpu.memory_space<smem>>
      %154 = vector.broadcast %153 : f32 to vector<8x16xf32>
      %155 = arith.addf %151, %154 : vector<8x16xf32>
      %156 = arith.minimumf %142, %155 : vector<8x16xf32>
      %157 = arith.addf %142, %155 : vector<8x16xf32>
      %cst_42 = arith.constant 1.000000e+00 : f32
      %158 = vector.broadcast %cst_42 : f32 to vector<8x16xf32>
      %159 = arith.subf %158, %157 : vector<8x16xf32>
      %160 = arith.minimumf %156, %159 : vector<8x16xf32>
      %cst_43 = arith.constant 0.000000e+00 : f32
      %161 = vector.broadcast %cst_43 : f32 to vector<8x16xf32>
      %162 = arith.cmpf oge, %160, %161 : vector<8x16xf32>
      %163 = arith.select %162, %142, %123 : vector<8x16xi1>, vector<8x16xf32>
      %164 = arith.select %162, %155, %124 : vector<8x16xi1>, vector<8x16xf32>
      %c6_44 = arith.constant 6 : index
      %165 = arith.index_cast %129 : i32 to index
      %166 = memref.load %arg2[%c6_44, %165] : memref<7x32xf32, #tpu.memory_space<smem>>
      %167 = vector.broadcast %166 : f32 to vector<8x16xf32>
      %168 = arith.select %162, %167, %128 : vector<8x16xi1>, vector<8x16xf32>
      %c4_i32 = arith.constant 4 : i32
      %169 = arith.addi %48, %c4_i32 : i32
      %c0_45 = arith.constant 0 : index
      %170 = arith.index_cast %169 : i32 to index
      %171 = memref.load %arg2[%c0_45, %170] : memref<7x32xf32, #tpu.memory_space<smem>>
      %172 = vector.broadcast %171 : f32 to vector<8x16xf32>
      %173 = arith.mulf %172, %14 : vector<8x16xf32>
      %c1_46 = arith.constant 1 : index
      %174 = arith.index_cast %169 : i32 to index
      %175 = memref.load %arg2[%c1_46, %174] : memref<7x32xf32, #tpu.memory_space<smem>>
      %176 = vector.broadcast %175 : f32 to vector<8x16xf32>
      %177 = arith.mulf %176, %20 : vector<8x16xf32>
      %178 = arith.addf %173, %177 : vector<8x16xf32>
      %c2_47 = arith.constant 2 : index
      %179 = arith.index_cast %169 : i32 to index
      %180 = memref.load %arg2[%c2_47, %179] : memref<7x32xf32, #tpu.memory_space<smem>>
      %181 = vector.broadcast %180 : f32 to vector<8x16xf32>
      %182 = arith.addf %178, %181 : vector<8x16xf32>
      %c3_48 = arith.constant 3 : index
      %183 = arith.index_cast %169 : i32 to index
      %184 = memref.load %arg2[%c3_48, %183] : memref<7x32xf32, #tpu.memory_space<smem>>
      %185 = vector.broadcast %184 : f32 to vector<8x16xf32>
      %186 = arith.mulf %185, %14 : vector<8x16xf32>
      %c4_49 = arith.constant 4 : index
      %187 = arith.index_cast %169 : i32 to index
      %188 = memref.load %arg2[%c4_49, %187] : memref<7x32xf32, #tpu.memory_space<smem>>
      %189 = vector.broadcast %188 : f32 to vector<8x16xf32>
      %190 = arith.mulf %189, %20 : vector<8x16xf32>
      %191 = arith.addf %186, %190 : vector<8x16xf32>
      %c5_50 = arith.constant 5 : index
      %192 = arith.index_cast %169 : i32 to index
      %193 = memref.load %arg2[%c5_50, %192] : memref<7x32xf32, #tpu.memory_space<smem>>
      %194 = vector.broadcast %193 : f32 to vector<8x16xf32>
      %195 = arith.addf %191, %194 : vector<8x16xf32>
      %196 = arith.minimumf %182, %195 : vector<8x16xf32>
      %197 = arith.addf %182, %195 : vector<8x16xf32>
      %cst_51 = arith.constant 1.000000e+00 : f32
      %198 = vector.broadcast %cst_51 : f32 to vector<8x16xf32>
      %199 = arith.subf %198, %197 : vector<8x16xf32>
      %200 = arith.minimumf %196, %199 : vector<8x16xf32>
      %cst_52 = arith.constant 0.000000e+00 : f32
      %201 = vector.broadcast %cst_52 : f32 to vector<8x16xf32>
      %202 = arith.cmpf oge, %200, %201 : vector<8x16xf32>
      %203 = arith.select %202, %182, %163 : vector<8x16xi1>, vector<8x16xf32>
      %204 = arith.select %202, %195, %164 : vector<8x16xi1>, vector<8x16xf32>
      %c6_53 = arith.constant 6 : index
      %205 = arith.index_cast %169 : i32 to index
      %206 = memref.load %arg2[%c6_53, %205] : memref<7x32xf32, #tpu.memory_space<smem>>
      %207 = vector.broadcast %206 : f32 to vector<8x16xf32>
      %208 = arith.select %202, %207, %168 : vector<8x16xi1>, vector<8x16xf32>
      %c3_i32 = arith.constant 3 : i32
      %209 = arith.addi %48, %c3_i32 : i32
      %c0_54 = arith.constant 0 : index
      %210 = arith.index_cast %209 : i32 to index
      %211 = memref.load %arg2[%c0_54, %210] : memref<7x32xf32, #tpu.memory_space<smem>>
      %212 = vector.broadcast %211 : f32 to vector<8x16xf32>
      %213 = arith.mulf %212, %14 : vector<8x16xf32>
      %c1_55 = arith.constant 1 : index
      %214 = arith.index_cast %209 : i32 to index
      %215 = memref.load %arg2[%c1_55, %214] : memref<7x32xf32, #tpu.memory_space<smem>>
      %216 = vector.broadcast %215 : f32 to vector<8x16xf32>
      %217 = arith.mulf %216, %20 : vector<8x16xf32>
      %218 = arith.addf %213, %217 : vector<8x16xf32>
      %c2_56 = arith.constant 2 : index
      %219 = arith.index_cast %209 : i32 to index
      %220 = memref.load %arg2[%c2_56, %219] : memref<7x32xf32, #tpu.memory_space<smem>>
      %221 = vector.broadcast %220 : f32 to vector<8x16xf32>
      %222 = arith.addf %218, %221 : vector<8x16xf32>
      %c3_57 = arith.constant 3 : index
      %223 = arith.index_cast %209 : i32 to index
      %224 = memref.load %arg2[%c3_57, %223] : memref<7x32xf32, #tpu.memory_space<smem>>
      %225 = vector.broadcast %224 : f32 to vector<8x16xf32>
      %226 = arith.mulf %225, %14 : vector<8x16xf32>
      %c4_58 = arith.constant 4 : index
      %227 = arith.index_cast %209 : i32 to index
      %228 = memref.load %arg2[%c4_58, %227] : memref<7x32xf32, #tpu.memory_space<smem>>
      %229 = vector.broadcast %228 : f32 to vector<8x16xf32>
      %230 = arith.mulf %229, %20 : vector<8x16xf32>
      %231 = arith.addf %226, %230 : vector<8x16xf32>
      %c5_59 = arith.constant 5 : index
      %232 = arith.index_cast %209 : i32 to index
      %233 = memref.load %arg2[%c5_59, %232] : memref<7x32xf32, #tpu.memory_space<smem>>
      %234 = vector.broadcast %233 : f32 to vector<8x16xf32>
      %235 = arith.addf %231, %234 : vector<8x16xf32>
      %236 = arith.minimumf %222, %235 : vector<8x16xf32>
      %237 = arith.addf %222, %235 : vector<8x16xf32>
      %cst_60 = arith.constant 1.000000e+00 : f32
      %238 = vector.broadcast %cst_60 : f32 to vector<8x16xf32>
      %239 = arith.subf %238, %237 : vector<8x16xf32>
      %240 = arith.minimumf %236, %239 : vector<8x16xf32>
      %cst_61 = arith.constant 0.000000e+00 : f32
      %241 = vector.broadcast %cst_61 : f32 to vector<8x16xf32>
      %242 = arith.cmpf oge, %240, %241 : vector<8x16xf32>
      %243 = arith.select %242, %222, %203 : vector<8x16xi1>, vector<8x16xf32>
      %244 = arith.select %242, %235, %204 : vector<8x16xi1>, vector<8x16xf32>
      %c6_62 = arith.constant 6 : index
      %245 = arith.index_cast %209 : i32 to index
      %246 = memref.load %arg2[%c6_62, %245] : memref<7x32xf32, #tpu.memory_space<smem>>
      %247 = vector.broadcast %246 : f32 to vector<8x16xf32>
      %248 = arith.select %242, %247, %208 : vector<8x16xi1>, vector<8x16xf32>
      %c2_i32 = arith.constant 2 : i32
      %249 = arith.addi %48, %c2_i32 : i32
      %c0_63 = arith.constant 0 : index
      %250 = arith.index_cast %249 : i32 to index
      %251 = memref.load %arg2[%c0_63, %250] : memref<7x32xf32, #tpu.memory_space<smem>>
      %252 = vector.broadcast %251 : f32 to vector<8x16xf32>
      %253 = arith.mulf %252, %14 : vector<8x16xf32>
      %c1_64 = arith.constant 1 : index
      %254 = arith.index_cast %249 : i32 to index
      %255 = memref.load %arg2[%c1_64, %254] : memref<7x32xf32, #tpu.memory_space<smem>>
      %256 = vector.broadcast %255 : f32 to vector<8x16xf32>
      %257 = arith.mulf %256, %20 : vector<8x16xf32>
      %258 = arith.addf %253, %257 : vector<8x16xf32>
      %c2_65 = arith.constant 2 : index
      %259 = arith.index_cast %249 : i32 to index
      %260 = memref.load %arg2[%c2_65, %259] : memref<7x32xf32, #tpu.memory_space<smem>>
      %261 = vector.broadcast %260 : f32 to vector<8x16xf32>
      %262 = arith.addf %258, %261 : vector<8x16xf32>
      %c3_66 = arith.constant 3 : index
      %263 = arith.index_cast %249 : i32 to index
      %264 = memref.load %arg2[%c3_66, %263] : memref<7x32xf32, #tpu.memory_space<smem>>
      %265 = vector.broadcast %264 : f32 to vector<8x16xf32>
      %266 = arith.mulf %265, %14 : vector<8x16xf32>
      %c4_67 = arith.constant 4 : index
      %267 = arith.index_cast %249 : i32 to index
      %268 = memref.load %arg2[%c4_67, %267] : memref<7x32xf32, #tpu.memory_space<smem>>
      %269 = vector.broadcast %268 : f32 to vector<8x16xf32>
      %270 = arith.mulf %269, %20 : vector<8x16xf32>
      %271 = arith.addf %266, %270 : vector<8x16xf32>
      %c5_68 = arith.constant 5 : index
      %272 = arith.index_cast %249 : i32 to index
      %273 = memref.load %arg2[%c5_68, %272] : memref<7x32xf32, #tpu.memory_space<smem>>
      %274 = vector.broadcast %273 : f32 to vector<8x16xf32>
      %275 = arith.addf %271, %274 : vector<8x16xf32>
      %276 = arith.minimumf %262, %275 : vector<8x16xf32>
      %277 = arith.addf %262, %275 : vector<8x16xf32>
      %cst_69 = arith.constant 1.000000e+00 : f32
      %278 = vector.broadcast %cst_69 : f32 to vector<8x16xf32>
      %279 = arith.subf %278, %277 : vector<8x16xf32>
      %280 = arith.minimumf %276, %279 : vector<8x16xf32>
      %cst_70 = arith.constant 0.000000e+00 : f32
      %281 = vector.broadcast %cst_70 : f32 to vector<8x16xf32>
      %282 = arith.cmpf oge, %280, %281 : vector<8x16xf32>
      %283 = arith.select %282, %262, %243 : vector<8x16xi1>, vector<8x16xf32>
      %284 = arith.select %282, %275, %244 : vector<8x16xi1>, vector<8x16xf32>
      %c6_71 = arith.constant 6 : index
      %285 = arith.index_cast %249 : i32 to index
      %286 = memref.load %arg2[%c6_71, %285] : memref<7x32xf32, #tpu.memory_space<smem>>
      %287 = vector.broadcast %286 : f32 to vector<8x16xf32>
      %288 = arith.select %282, %287, %248 : vector<8x16xi1>, vector<8x16xf32>
      %c1_i32_72 = arith.constant 1 : i32
      %289 = arith.addi %48, %c1_i32_72 : i32
      %c0_73 = arith.constant 0 : index
      %290 = arith.index_cast %289 : i32 to index
      %291 = memref.load %arg2[%c0_73, %290] : memref<7x32xf32, #tpu.memory_space<smem>>
      %292 = vector.broadcast %291 : f32 to vector<8x16xf32>
      %293 = arith.mulf %292, %14 : vector<8x16xf32>
      %c1_74 = arith.constant 1 : index
      %294 = arith.index_cast %289 : i32 to index
      %295 = memref.load %arg2[%c1_74, %294] : memref<7x32xf32, #tpu.memory_space<smem>>
      %296 = vector.broadcast %295 : f32 to vector<8x16xf32>
      %297 = arith.mulf %296, %20 : vector<8x16xf32>
      %298 = arith.addf %293, %297 : vector<8x16xf32>
      %c2_75 = arith.constant 2 : index
      %299 = arith.index_cast %289 : i32 to index
      %300 = memref.load %arg2[%c2_75, %299] : memref<7x32xf32, #tpu.memory_space<smem>>
      %301 = vector.broadcast %300 : f32 to vector<8x16xf32>
      %302 = arith.addf %298, %301 : vector<8x16xf32>
      %c3_76 = arith.constant 3 : index
      %303 = arith.index_cast %289 : i32 to index
      %304 = memref.load %arg2[%c3_76, %303] : memref<7x32xf32, #tpu.memory_space<smem>>
      %305 = vector.broadcast %304 : f32 to vector<8x16xf32>
      %306 = arith.mulf %305, %14 : vector<8x16xf32>
      %c4_77 = arith.constant 4 : index
      %307 = arith.index_cast %289 : i32 to index
      %308 = memref.load %arg2[%c4_77, %307] : memref<7x32xf32, #tpu.memory_space<smem>>
      %309 = vector.broadcast %308 : f32 to vector<8x16xf32>
      %310 = arith.mulf %309, %20 : vector<8x16xf32>
      %311 = arith.addf %306, %310 : vector<8x16xf32>
      %c5_78 = arith.constant 5 : index
      %312 = arith.index_cast %289 : i32 to index
      %313 = memref.load %arg2[%c5_78, %312] : memref<7x32xf32, #tpu.memory_space<smem>>
      %314 = vector.broadcast %313 : f32 to vector<8x16xf32>
      %315 = arith.addf %311, %314 : vector<8x16xf32>
      %316 = arith.minimumf %302, %315 : vector<8x16xf32>
      %317 = arith.addf %302, %315 : vector<8x16xf32>
      %cst_79 = arith.constant 1.000000e+00 : f32
      %318 = vector.broadcast %cst_79 : f32 to vector<8x16xf32>
      %319 = arith.subf %318, %317 : vector<8x16xf32>
      %320 = arith.minimumf %316, %319 : vector<8x16xf32>
      %cst_80 = arith.constant 0.000000e+00 : f32
      %321 = vector.broadcast %cst_80 : f32 to vector<8x16xf32>
      %322 = arith.cmpf oge, %320, %321 : vector<8x16xf32>
      %323 = arith.select %322, %302, %283 : vector<8x16xi1>, vector<8x16xf32>
      %324 = arith.select %322, %315, %284 : vector<8x16xi1>, vector<8x16xf32>
      %c6_81 = arith.constant 6 : index
      %325 = arith.index_cast %289 : i32 to index
      %326 = memref.load %arg2[%c6_81, %325] : memref<7x32xf32, #tpu.memory_space<smem>>
      %327 = vector.broadcast %326 : f32 to vector<8x16xf32>
      %328 = arith.select %322, %327, %288 : vector<8x16xi1>, vector<8x16xf32>
      %c0_i32_82 = arith.constant 0 : i32
      %329 = arith.addi %48, %c0_i32_82 : i32
      %c0_83 = arith.constant 0 : index
      %330 = arith.index_cast %329 : i32 to index
      %331 = memref.load %arg2[%c0_83, %330] : memref<7x32xf32, #tpu.memory_space<smem>>
      %332 = vector.broadcast %331 : f32 to vector<8x16xf32>
      %333 = arith.mulf %332, %14 : vector<8x16xf32>
      %c1_84 = arith.constant 1 : index
      %334 = arith.index_cast %329 : i32 to index
      %335 = memref.load %arg2[%c1_84, %334] : memref<7x32xf32, #tpu.memory_space<smem>>
      %336 = vector.broadcast %335 : f32 to vector<8x16xf32>
      %337 = arith.mulf %336, %20 : vector<8x16xf32>
      %338 = arith.addf %333, %337 : vector<8x16xf32>
      %c2_85 = arith.constant 2 : index
      %339 = arith.index_cast %329 : i32 to index
      %340 = memref.load %arg2[%c2_85, %339] : memref<7x32xf32, #tpu.memory_space<smem>>
      %341 = vector.broadcast %340 : f32 to vector<8x16xf32>
      %342 = arith.addf %338, %341 : vector<8x16xf32>
      %c3_86 = arith.constant 3 : index
      %343 = arith.index_cast %329 : i32 to index
      %344 = memref.load %arg2[%c3_86, %343] : memref<7x32xf32, #tpu.memory_space<smem>>
      %345 = vector.broadcast %344 : f32 to vector<8x16xf32>
      %346 = arith.mulf %345, %14 : vector<8x16xf32>
      %c4_87 = arith.constant 4 : index
      %347 = arith.index_cast %329 : i32 to index
      %348 = memref.load %arg2[%c4_87, %347] : memref<7x32xf32, #tpu.memory_space<smem>>
      %349 = vector.broadcast %348 : f32 to vector<8x16xf32>
      %350 = arith.mulf %349, %20 : vector<8x16xf32>
      %351 = arith.addf %346, %350 : vector<8x16xf32>
      %c5_88 = arith.constant 5 : index
      %352 = arith.index_cast %329 : i32 to index
      %353 = memref.load %arg2[%c5_88, %352] : memref<7x32xf32, #tpu.memory_space<smem>>
      %354 = vector.broadcast %353 : f32 to vector<8x16xf32>
      %355 = arith.addf %351, %354 : vector<8x16xf32>
      %356 = arith.minimumf %342, %355 : vector<8x16xf32>
      %357 = arith.addf %342, %355 : vector<8x16xf32>
      %cst_89 = arith.constant 1.000000e+00 : f32
      %358 = vector.broadcast %cst_89 : f32 to vector<8x16xf32>
      %359 = arith.subf %358, %357 : vector<8x16xf32>
      %360 = arith.minimumf %356, %359 : vector<8x16xf32>
      %cst_90 = arith.constant 0.000000e+00 : f32
      %361 = vector.broadcast %cst_90 : f32 to vector<8x16xf32>
      %362 = arith.cmpf oge, %360, %361 : vector<8x16xf32>
      %363 = arith.select %362, %342, %323 : vector<8x16xi1>, vector<8x16xf32>
      %364 = arith.select %362, %355, %324 : vector<8x16xi1>, vector<8x16xf32>
      %c6_91 = arith.constant 6 : index
      %365 = arith.index_cast %329 : i32 to index
      %366 = memref.load %arg2[%c6_91, %365] : memref<7x32xf32, #tpu.memory_space<smem>>
      %367 = vector.broadcast %366 : f32 to vector<8x16xf32>
      %368 = arith.select %362, %367, %328 : vector<8x16xi1>, vector<8x16xf32>
      scf.yield %363, %364, %368 : vector<8x16xf32>, vector<8x16xf32>, vector<8x16xf32>
    }
    %cst_6 = arith.constant 0.000000e+00 : f32
    %26 = vector.broadcast %cst_6 : f32 to vector<8x16xf32>
    %27 = arith.cmpf oge, %25#2, %26 : vector<8x16xf32>
    %28 = arith.addf %25#0, %25#1 : vector<8x16xf32>
    %cst_7 = arith.constant 1.000000e+00 : f32
    %29 = vector.broadcast %cst_7 : f32 to vector<8x16xf32>
    %30 = arith.subf %29, %28 : vector<8x16xf32>
    %cst_8 = arith.constant 0.000000e+00 : f32
    %31 = vector.broadcast %cst_8 : f32 to vector<8x16xf32>
    %32 = arith.select %27, %30, %31 : vector<8x16xi1>, vector<8x16xf32>
    %c0_9 = arith.constant 0 : index
    %c0_10 = arith.constant 0 : index
    %c0_11 = arith.constant 0 : index
    %33 = vector.load %arg3[%c0_9, %c0_10, %c0_11] : memref<4x8x16xf32, #tpu.memory_space<vmem>>, vector<1x8x16xf32>
    %34 = vector.shape_cast %33 : vector<1x8x16xf32> to vector<8x16xf32>
    %35 = vector.shape_cast %32 : vector<8x16xf32> to vector<1x8x16xf32>
    tpu.vector_store %arg3[%c0_9, %c0_10, %c0_11], %35 {strides = array<i32>} : memref<4x8x16xf32, #tpu.memory_space<vmem>>, vector<1x8x16xf32>,
    %c1_12 = arith.constant 1 : index
    %c0_13 = arith.constant 0 : index
    %c0_14 = arith.constant 0 : index
    %36 = vector.load %arg3[%c1_12, %c0_13, %c0_14] : memref<4x8x16xf32, #tpu.memory_space<vmem>>, vector<1x8x16xf32>
    %37 = vector.shape_cast %36 : vector<1x8x16xf32> to vector<8x16xf32>
    %38 = vector.shape_cast %25#0 : vector<8x16xf32> to vector<1x8x16xf32>
    tpu.vector_store %arg3[%c1_12, %c0_13, %c0_14], %38 {strides = array<i32>} : memref<4x8x16xf32, #tpu.memory_space<vmem>>, vector<1x8x16xf32>,
    %c2 = arith.constant 2 : index
    %c0_15 = arith.constant 0 : index
    %c0_16 = arith.constant 0 : index
    %39 = vector.load %arg3[%c2, %c0_15, %c0_16] : memref<4x8x16xf32, #tpu.memory_space<vmem>>, vector<1x8x16xf32>
    %40 = vector.shape_cast %39 : vector<1x8x16xf32> to vector<8x16xf32>
    %41 = vector.shape_cast %25#1 : vector<8x16xf32> to vector<1x8x16xf32>
    tpu.vector_store %arg3[%c2, %c0_15, %c0_16], %41 {strides = array<i32>} : memref<4x8x16xf32, #tpu.memory_space<vmem>>, vector<1x8x16xf32>,
    %c3 = arith.constant 3 : index
    %c0_17 = arith.constant 0 : index
    %c0_18 = arith.constant 0 : index
    %42 = vector.load %arg3[%c3, %c0_17, %c0_18] : memref<4x8x16xf32, #tpu.memory_space<vmem>>, vector<1x8x16xf32>
    %43 = vector.shape_cast %42 : vector<1x8x16xf32> to vector<8x16xf32>
    %44 = vector.shape_cast %25#2 : vector<8x16xf32> to vector<1x8x16xf32>
    tpu.vector_store %arg3[%c3, %c0_17, %c0_18], %44 {strides = array<i32>} : memref<4x8x16xf32, #tpu.memory_space<vmem>>, vector<1x8x16xf32>,
    return
  }
  func.func @transform_0(%arg0: i32) -> (i32, i32) {
    %c0_i32 = arith.constant 0 : i32
    %c0_i32_0 = arith.constant 0 : i32
    %c0_i32_1 = arith.constant 0 : i32
    return %c0_i32, %c0_i32_0 : i32, i32
  }
  func.func @transform_1(%arg0: i32) -> (i32, i32) {
    %c0_i32 = arith.constant 0 : i32
    %c0_i32_0 = arith.constant 0 : i32
    %c0_i32_1 = arith.constant 0 : i32
    return %c0_i32, %c0_i32_0 : i32, i32
  }
  func.func @transform_2(%arg0: i32) -> (i32, i32, i32) {
    %c0_i32 = arith.constant 0 : i32
    %c0_i32_0 = arith.constant 0 : i32
    %c0_i32_1 = arith.constant 0 : i32
    return %c0_i32, %arg0, %c0_i32_0 : i32, i32, i32
  }
}

</mosaic_0001>

<llo_original>
// kernel: tpu_custom_call.1
$region0: #{tpu_custom_call.1}
  #allocation0 [shape = 'u32[]', space=smem, size = 0x4, offset = 0x4, fixed_abs, tag = 'smem constant byte address 0x4 - core index']
  #allocation1 [shape = 'u32[72,128]{1,0:T(1,128)}', space=vmem, size = 0x9000, scoped, tag = 'internal scratch']
  %s0 = inlined_call_operand.hbm [shape: s32[2,2], index: 0, kind: input, shape index: {}]
  %s1 = inlined_call_operand.hbm [shape: f32[7,32], index: 1, kind: input, shape index: {}]
  %s2 = inlined_call_operand.hbm [shape: f32[4,16,16], index: 2, kind: output, shape index: {}]
  %s3 = sld [smem:[#allocation0]]
  $region56: #{tpu_custom_call.1} parent=0
    _
  %s5 = ssub.s32 1, %s3
  %s6 = scalar_select 0, %s5, %s3
  $region1: #{tpu_custom_call.1} parent=0
    #allocation2 [shape = 'u8[1024]{0}', space=smem, size = 0x400, scoped, tag = 'input window, operand 0, single buffered']
    #allocation3 [shape = 's32[2]{0}', space=sflag, size = 0x8, scoped, tag = 'scoped memory for tpu_custom_call.1']
    #allocation4 [shape = 's32[2]{0}', space=sflag, size = 0x8, scoped, tag = 'scoped memory for tpu_custom_call.1']
    #allocation5 [shape = 'u8[4096]{0}', space=smem, size = 0x1000, scoped, tag = 'input window, operand 1, single buffered']
    #allocation6 [shape = 's32[1]{0}', space=sflag, size = 0x4, scoped, tag = 'scoped memory for tpu_custom_call.1']
    #allocation7 [shape = 'u8[32768]{0}', space=vmem, size = 0x8000, scoped, tag = 'output window, operand 0']
    %7 = vsyncpa [#allocation4], 0
    %8 = vsyncpa [#allocation6], 0
    %9 = vsyncpa [#allocation3], 0
    %s10 = scalar_lea.sflag [#allocation3], 1
    %11 = vsyncpa %s10, 0
    loop: start=0, step=1, limit=4
    $region2: #{tpu_custom_call.1} parent=1 // loop_pre_header
      _
    $region3: #{tpu_custom_call.1} parent=1 // loop_header
      %s13 = sphi 0, %s17
      %p14 = scmp.ge.s32.totalorder %s13, 4
      %s21 = sphi 0, %s21
      %s23 = sphi 0, %s21
      %s24 = sphi 0, %s23
      %s38 = sphi 0, %s24
      %s42 = sphi 0, %s42
      %s44 = sphi 0, %s42
      %s45 = sphi 0, %s44
      %s59 = sphi 0, %s45
      %s65 = sphi 0, %s67
      %s68 = sphi 0, %s65
      %s69 = sphi 0, %s68
      %s85 = sphi 0, %s69
    $region4: #{tpu_custom_call.1} parent=1 // loop_header_branch
      %16 = sbr.rel (%p14) target = $region8
    $region5: #{tpu_custom_call.1} parent=1 // loop_body
      %s18 = ssub.s32 %s13, 1
      %s19 = ssub.s32 %s13, 2
      %s20 = sadd.s32 %s13, 1
      %s22 = sadd.s32 %s21, 1
      %p25 = scmp.eq.s32.totalorder %s13, 1
      %p26 = scmp.ne.s32.totalorder %s21, %s23
      %p27 = scmp.eq.s32.totalorder %s13, 0
      %p28 = por %p26, %p27
      %p29 = scmp.ne.s32.totalorder %s21, %s23
      %p30 = scmp.eq.s32.totalorder %s18, 1
      %p31 = por %p29, %p30
      %p32 = scmp.ne.s32.totalorder %s23, %s24
      %p33 = scmp.eq.s32.totalorder %s18, 0
      %p34 = por %p32, %p33
      %p35 = scmp.ne.s32.totalorder %s23, %s24
      %p36 = scmp.eq.s32.totalorder %s19, 1
      %p37 = por %p35, %p36
      %p39 = scmp.ne.s32.totalorder %s24, %s38
      %p40 = scmp.eq.s32.totalorder %s19, 0
      %p41 = por %p39, %p40
      %s43 = sadd.s32 %s42, 1
      %p46 = scmp.eq.s32.totalorder %s13, 1
      %p47 = scmp.ne.s32.totalorder %s42, %s44
      %p48 = scmp.eq.s32.totalorder %s13, 0
      %p49 = por %p47, %p48
      %p50 = scmp.ne.s32.totalorder %s42, %s44
      %p51 = scmp.eq.s32.totalorder %s18, 1
      %p52 = por %p50, %p51
      %p53 = scmp.ne.s32.totalorder %s44, %s45
      %p54 = scmp.eq.s32.totalorder %s18, 0
      %p55 = por %p53, %p54
      %p56 = scmp.ne.s32.totalorder %s44, %s45
      %p57 = scmp.eq.s32.totalorder %s19, 1
      %p58 = por %p56, %p57
      %p60 = scmp.ne.s32.totalorder %s45, %s59
      %p61 = scmp.eq.s32.totalorder %s19, 0
      %p62 = por %p60, %p61
      %s63 = ssub.s32 %s13, %s20
      %p64 = scmp.eq.s32.totalorder %s63, 0
      %s66 = sadd.s32 %s65, 1
      %s67 = scalar_select %p64, %s65, %s66
      %p70 = pneg %p64
      %p71 = scmp.eq.s32.totalorder %s13, 1
      %p72 = por %p70, %p71
      %p73 = scmp.ne.s32.totalorder %s65, %s68
      %p74 = scmp.eq.s32.totalorder %s13, 0
      %p75 = por %p73, %p74
      %p76 = scmp.ne.s32.totalorder %s65, %s68
      %p77 = scmp.eq.s32.totalorder %s18, 1
      %p78 = por %p76, %p77
      %p79 = scmp.ne.s32.totalorder %s68, %s69
      %p80 = scmp.eq.s32.totalorder %s18, 0
      %p81 = por %p79, %p80
      %p82 = scmp.ne.s32.totalorder %s68, %s69
      %p83 = scmp.eq.s32.totalorder %s19, 1
      %p84 = por %p82, %p83
      %p86 = scmp.ne.s32.totalorder %s69, %s85
      %p87 = scmp.eq.s32.totalorder %s19, 0
      %p88 = por %p86, %p87
      %p89 = scmp.le.s32.totalorder 1, %s13
      %p90 = scmp.lt.s32.totalorder %s13, 3
      %p91 = pnand %p89, %p90
      %p92 = pneg %p91
      // Predicated region
      $region9: #{tpu_custom_call.1} parent=5 // pred_check
        _
      $region10: #{tpu_custom_call.1} parent=5 // pred_check_branch
        %94 = sbr.rel (%p91) target = $region12
      $region11: #{tpu_custom_call.1} parent=5 // pred_region
        %s95 = ssub.s32 %s13, 1
        // Predicated region
        $region13: #{tpu_custom_call.1} parent=11 // pred_check
          %p96 = pneg %p34
        $region14: #{tpu_custom_call.1} parent=11 // pred_check_branch
          %98 = sbr.rel (%p96) target = $region16
        $region15: #{tpu_custom_call.1} parent=11 // pred_region
          %100 = vsyncadd [#allocation4], 0
          %s102 = sshll.u32 %s0, 4
          %s103 = int_to_ptr.hbm [resolvable:$true] %s102
          %105 = dma.hbm_to_smem %s103, 32, [#allocation2], [#allocation4]
        $region16: #{tpu_custom_call.1} parent=11 // pred_fallthru
          _
        // Predicated region
        $region17: #{tpu_custom_call.1} parent=11 // pred_check
          %p106 = pneg %p55
        $region18: #{tpu_custom_call.1} parent=11 // pred_check_branch
          %108 = sbr.rel (%p106) target = $region20
        $region19: #{tpu_custom_call.1} parent=11 // pred_region
          %110 = vsyncadd [#allocation6], 0
          %s112 = sshll.u32 %s1, 4
          %s113 = int_to_ptr.hbm [resolvable:$true] %s112
          %115 = dma.hbm_to_smem %s113, 128, [#allocation5], [#allocation6]
        $region20: #{tpu_custom_call.1} parent=11 // pred_fallthru
          _
      $region12: #{tpu_custom_call.1} parent=5 // pred_fallthru
        _
      %p116 = scmp.lt.s32.totalorder %s13, 2
      // Predicated region
      $region21: #{tpu_custom_call.1} parent=5 // pred_check
        %p117 = pneg %p116
      $region22: #{tpu_custom_call.1} parent=5 // pred_check_branch
        %119 = sbr.rel (%p117) target = $region24
      $region23: #{tpu_custom_call.1} parent=5 // pred_region
        _
      $region24: #{tpu_custom_call.1} parent=5 // pred_fallthru
        _
      %p120 = scmp.le.s32.totalorder 1, %s13
      %p121 = scmp.lt.s32.totalorder %s13, 3
      %p122 = pnand %p120, %p121
      %p123 = pneg %p122
      // Predicated region
      $region25: #{tpu_custom_call.1} parent=5 // pred_check
        _
      $region26: #{tpu_custom_call.1} parent=5 // pred_check_branch
        %125 = sbr.rel (%p122) target = $region28
      $region27: #{tpu_custom_call.1} parent=5 // pred_region
        %s126 = ssub.s32 %s13, 1
        // Predicated region
        $region29: #{tpu_custom_call.1} parent=27 // pred_check
          %p127 = pneg %p34
        $region30: #{tpu_custom_call.1} parent=27 // pred_check_branch
          %129 = sbr.rel (%p127) target = $region32
        $region31: #{tpu_custom_call.1} parent=27 // pred_region
          %131 = dma.done [#allocation4], 32
        $region32: #{tpu_custom_call.1} parent=27 // pred_fallthru
          _
        // Predicated region
        $region33: #{tpu_custom_call.1} parent=27 // pred_check
          %p132 = pneg %p55
        $region34: #{tpu_custom_call.1} parent=27 // pred_check_branch
          %134 = sbr.rel (%p132) target = $region36
        $region35: #{tpu_custom_call.1} parent=27 // pred_region
          %136 = dma.done [#allocation6], 128
        $region36: #{tpu_custom_call.1} parent=27 // pred_fallthru
          _
        %137 = sfence
        %p138 = pneg %p34
        %p139 = pneg %p31
        %p140 = pneg %p55
        %p141 = pneg %p52
        %p142 = pneg %p81
        %p143 = pneg %p78
        %s144 = sand.u32 %s68, 1
        %s145 = scalar_lea.sflag [#allocation3], %s144
        %s146 = sand.u32 %s68, 1
        %s147 = smul.addr %s146, 32
        %s148 = scalar_lea.vmem [#allocation7], %s147
        %s149 = sld [smem:[#allocation2 + %s18]]
        %s150 = sshra.s32 %s18, 7
        %s151 = sand.u32 %s18, 127
        %s152 = sadd.s32 %s150, 1
        %s153 = smul.u32 %s152, 128
        %s154 = sshra.s32 %s18, 7
        %s155 = sand.u32 %s18, 127
        %s156 = sadd.s32 %s153, %s155
        %s157 = sld [smem:[#allocation2 + %s156]]
        %s158 = smul.u32 %s18, 8
        %v159 = vlaneseq
        %v160 = vshrl.u32 %v159, 7
        %v161 = vstv %s158
        %v162 = vadd.s32 %v160, %v161
        %v163 = vcvt.s32.f32 %v162
        %v164 = vlaneseq
        %v165 = vand.u32 %v164, 127
        %v166 = vcvt.s32.f32 %v165
        %v167 = vadd.f32 %v166, 0.5
        %v168 = vmul.f32 %v167, 0.0625
        %v169 = vadd.f32 %v163, 0.5
        %v170 = vmul.f32 %v169, 0.0625
        %v171 = vsub.f32 1.0, %v170
        // While loop
        $region37: #{tpu_custom_call.1} parent=27 // loop_pre_header
          _
        $region38: #{tpu_custom_call.1} parent=27 // loop_header
          %s173 = sphi 0, %s175
          %p174 = scmp.ge.s32.totalorder %s173, %s157
          %v178 = vphi 0.0, %v600
          %v179 = vphi 0.0, %v601
          %v180 = vphi -1.0, %v607
        $region39: #{tpu_custom_call.1} parent=27 // loop_header_branch
          %177 = sbr.rel (%p174) target = $region43
        $region40: #{tpu_custom_call.1} parent=27 // loop_body
          %s181 = ssub.s32 %s157, 1
          %s182 = ssub.s32 %s181, %s173
          %s183 = smul.u32 %s182, 8
          %s184 = sadd.s32 %s149, %s183
          %s185 = sadd.s32 %s184, 7
          %s186 = sld [smem:[#allocation5 + %s185]]
          %v187 = vstv %s186
          %v188 = vmul.f32 %v187, %v168
          %s189 = sshra.s32 %s185, 7
          %s190 = sand.u32 %s185, 127
          %s191 = sadd.s32 %s189, 1
          %s192 = smul.u32 %s191, 128
          %s193 = sshra.s32 %s185, 7
          %s194 = sand.u32 %s185, 127
          %s195 = sadd.s32 %s192, %s194
          %s196 = sld [smem:[#allocation5 + %s195]]
          %v197 = vstv %s196
          %v198 = vmul.f32 %v197, %v171
          %v199 = vadd.f32 %v188, %v198
          %s200 = sadd.s32 %s189, 2
          %s201 = smul.u32 %s200, 128
          %s202 = sadd.s32 %s201, %s194
          %s203 = sld [smem:[#allocation5 + %s202]]
          %v204 = vstv %s203
          %v205 = vadd.f32 %v199, %v204
          %s206 = sadd.s32 %s189, 3
          %s207 = smul.u32 %s206, 128
          %s208 = sadd.s32 %s207, %s194
          %s209 = sld [smem:[#allocation5 + %s208]]
          %v210 = vstv %s209
          %v211 = vmul.f32 %v210, %v168
          %s212 = sadd.s32 %s189, 4
          %s213 = smul.u32 %s212, 128
          %s214 = sadd.s32 %s213, %s194
          %s215 = sld [smem:[#allocation5 + %s214]]
          %v216 = vstv %s215
          %v217 = vmul.f32 %v216, %v171
          %v218 = vadd.f32 %v211, %v217
          %s219 = sadd.s32 %s189, 5
          %s220 = smul.u32 %s219, 128
          %s221 = sadd.s32 %s220, %s194
          %s222 = sld [smem:[#allocation5 + %s221]]
          %v223 = vstv %s222
          %v224 = vadd.f32 %v218, %v223
          %v225 = vmin.f32 %v205, %v224
          %v226 = vadd.f32 %v205, %v224
          %v227 = vsub.f32 1.0, %v226
          %v228 = vmin.f32 %v225, %v227
          %vm229 = vcmp.ge.f32.partialorder %v228, 0.0
          %v230 = vsel %vm229, %v205, %v178
          %v231 = vsel %vm229, %v224, %v179
          %s232 = sadd.s32 %s189, 6
          %s233 = smul.u32 %s232, 128
          %s234 = sadd.s32 %s233, %s194
          %s235 = sld [smem:[#allocation5 + %s234]]
          %v236 = vstv %s235
          %v237 = vsel %vm229, %v236, %v180
          %s238 = sadd.s32 %s184, 6
          %s239 = sld [smem:[#allocation5 + %s238]]
          %v240 = vstv %s239
          %v241 = vmul.f32 %v240, %v168
          %s242 = sshra.s32 %s238, 7
          %s243 = sand.u32 %s238, 127
          %s244 = sadd.s32 %s242, 1
          %s245 = smul.u32 %s244, 128
          %s246 = sshra.s32 %s238, 7
          %s247 = sand.u32 %s238, 127
          %s248 = sadd.s32 %s245, %s247
          %s249 = sld [smem:[#allocation5 + %s248]]
          %v250 = vstv %s249
          %v251 = vmul.f32 %v250, %v171
          %v252 = vadd.f32 %v241, %v251
          %s253 = sadd.s32 %s242, 2
          %s254 = smul.u32 %s253, 128
          %s255 = sadd.s32 %s254, %s247
          %s256 = sld [smem:[#allocation5 + %s255]]
          %v257 = vstv %s256
          %v258 = vadd.f32 %v252, %v257
          %s259 = sadd.s32 %s242, 3
          %s260 = smul.u32 %s259, 128
          %s261 = sadd.s32 %s260, %s247
          %s262 = sld [smem:[#allocation5 + %s261]]
          %v263 = vstv %s262
          %v264 = vmul.f32 %v263, %v168
          %s265 = sadd.s32 %s242, 4
          %s266 = smul.u32 %s265, 128
          %s267 = sadd.s32 %s266, %s247
          %s268 = sld [smem:[#allocation5 + %s267]]
          %v269 = vstv %s268
          %v270 = vmul.f32 %v269, %v171
          %v271 = vadd.f32 %v264, %v270
          %s272 = sadd.s32 %s242, 5
          %s273 = smul.u32 %s272, 128
          %s274 = sadd.s32 %s273, %s247
          %s275 = sld [smem:[#allocation5 + %s274]]
          %v276 = vstv %s275
          %v277 = vadd.f32 %v271, %v276
          %v278 = vmin.f32 %v258, %v277
          %v279 = vadd.f32 %v258, %v277
          %v280 = vsub.f32 1.0, %v279
          %v281 = vmin.f32 %v278, %v280
          %vm282 = vcmp.ge.f32.partialorder %v281, 0.0
          %v283 = vsel %vm282, %v258, %v230
          %v284 = vsel %vm282, %v277, %v231
          %s285 = sadd.s32 %s242, 6
          %s286 = smul.u32 %s285, 128
          %s287 = sadd.s32 %s286, %s247
          %s288 = sld [smem:[#allocation5 + %s287]]
          %v289 = vstv %s288
          %v290 = vsel %vm282, %v289, %v237
          %s291 = sadd.s32 %s184, 5
          %s292 = sld [smem:[#allocation5 + %s291]]
          %v293 = vstv %s292
          %v294 = vmul.f32 %v293, %v168
          %s295 = sshra.s32 %s291, 7
          %s296 = sand.u32 %s291, 127
          %s297 = sadd.s32 %s295, 1
          %s298 = smul.u32 %s297, 128
          %s299 = sshra.s32 %s291, 7
          %s300 = sand.u32 %s291, 127
          %s301 = sadd.s32 %s298, %s300
          %s302 = sld [smem:[#allocation5 + %s301]]
          %v303 = vstv %s302
          %v304 = vmul.f32 %v303, %v171
          %v305 = vadd.f32 %v294, %v304
          %s306 = sadd.s32 %s295, 2
          %s307 = smul.u32 %s306, 128
          %s308 = sadd.s32 %s307, %s300
          %s309 = sld [smem:[#allocation5 + %s308]]
          %v310 = vstv %s309
          %v311 = vadd.f32 %v305, %v310
          %s312 = sadd.s32 %s295, 3
          %s313 = smul.u32 %s312, 128
          %s314 = sadd.s32 %s313, %s300
          %s315 = sld [smem:[#allocation5 + %s314]]
          %v316 = vstv %s315
          %v317 = vmul.f32 %v316, %v168
          %s318 = sadd.s32 %s295, 4
          %s319 = smul.u32 %s318, 128
          %s320 = sadd.s32 %s319, %s300
          %s321 = sld [smem:[#allocation5 + %s320]]
          %v322 = vstv %s321
          %v323 = vmul.f32 %v322, %v171
          %v324 = vadd.f32 %v317, %v323
          %s325 = sadd.s32 %s295, 5
          %s326 = smul.u32 %s325, 128
          %s327 = sadd.s32 %s326, %s300
          %s328 = sld [smem:[#allocation5 + %s327]]
          %v329 = vstv %s328
          %v330 = vadd.f32 %v324, %v329
          %v331 = vmin.f32 %v311, %v330
          %v332 = vadd.f32 %v311, %v330
          %v333 = vsub.f32 1.0, %v332
          %v334 = vmin.f32 %v331, %v333
          %vm335 = vcmp.ge.f32.partialorder %v334, 0.0
          %v336 = vsel %vm335, %v311, %v283
          %v337 = vsel %vm335, %v330, %v284
          %s338 = sadd.s32 %s295, 6
          %s339 = smul.u32 %s338, 128
          %s340 = sadd.s32 %s339, %s300
          %s341 = sld [smem:[#allocation5 + %s340]]
          %v342 = vstv %s341
          %v343 = vsel %vm335, %v342, %v290
          %s344 = sadd.s32 %s184, 4
          %s345 = sld [smem:[#allocation5 + %s344]]
          %v346 = vstv %s345
          %v347 = vmul.f32 %v346, %v168
          %s348 = sshra.s32 %s344, 7
          %s349 = sand.u32 %s344, 127
          %s350 = sadd.s32 %s348, 1
          %s351 = smul.u32 %s350, 128
          %s352 = sshra.s32 %s344, 7
          %s353 = sand.u32 %s344, 127
          %s354 = sadd.s32 %s351, %s353
          %s355 = sld [smem:[#allocation5 + %s354]]
          %v356 = vstv %s355
          %v357 = vmul.f32 %v356, %v171
          %v358 = vadd.f32 %v347, %v357
          %s359 = sadd.s32 %s348, 2
          %s360 = smul.u32 %s359, 128
          %s361 = sadd.s32 %s360, %s353
          %s362 = sld [smem:[#allocation5 + %s361]]
          %v363 = vstv %s362
          %v364 = vadd.f32 %v358, %v363
          %s365 = sadd.s32 %s348, 3
          %s366 = smul.u32 %s365, 128
          %s367 = sadd.s32 %s366, %s353
          %s368 = sld [smem:[#allocation5 + %s367]]
          %v369 = vstv %s368
          %v370 = vmul.f32 %v369, %v168
          %s371 = sadd.s32 %s348, 4
          %s372 = smul.u32 %s371, 128
          %s373 = sadd.s32 %s372, %s353
          %s374 = sld [smem:[#allocation5 + %s373]]
          %v375 = vstv %s374
          %v376 = vmul.f32 %v375, %v171
          %v377 = vadd.f32 %v370, %v376
          %s378 = sadd.s32 %s348, 5
          %s379 = smul.u32 %s378, 128
          %s380 = sadd.s32 %s379, %s353
          %s381 = sld [smem:[#allocation5 + %s380]]
          %v382 = vstv %s381
          %v383 = vadd.f32 %v377, %v382
          %v384 = vmin.f32 %v364, %v383
          %v385 = vadd.f32 %v364, %v383
          %v386 = vsub.f32 1.0, %v385
          %v387 = vmin.f32 %v384, %v386
          %vm388 = vcmp.ge.f32.partialorder %v387, 0.0
          %v389 = vsel %vm388, %v364, %v336
          %v390 = vsel %vm388, %v383, %v337
          %s391 = sadd.s32 %s348, 6
          %s392 = smul.u32 %s391, 128
          %s393 = sadd.s32 %s392, %s353
          %s394 = sld [smem:[#allocation5 + %s393]]
          %v395 = vstv %s394
          %v396 = vsel %vm388, %v395, %v343
          %s397 = sadd.s32 %s184, 3
          %s398 = sld [smem:[#allocation5 + %s397]]
          %v399 = vstv %s398
          %v400 = vmul.f32 %v399, %v168
          %s401 = sshra.s32 %s397, 7
          %s402 = sand.u32 %s397, 127
          %s403 = sadd.s32 %s401, 1
          %s404 = smul.u32 %s403, 128
          %s405 = sshra.s32 %s397, 7
          %s406 = sand.u32 %s397, 127
          %s407 = sadd.s32 %s404, %s406
          %s408 = sld [smem:[#allocation5 + %s407]]
          %v409 = vstv %s408
          %v410 = vmul.f32 %v409, %v171
          %v411 = vadd.f32 %v400, %v410
          %s412 = sadd.s32 %s401, 2
          %s413 = smul.u32 %s412, 128
          %s414 = sadd.s32 %s413, %s406
          %s415 = sld [smem:[#allocation5 + %s414]]
          %v416 = vstv %s415
          %v417 = vadd.f32 %v411, %v416
          %s418 = sadd.s32 %s401, 3
          %s419 = smul.u32 %s418, 128
          %s420 = sadd.s32 %s419, %s406
          %s421 = sld [smem:[#allocation5 + %s420]]
          %v422 = vstv %s421
          %v423 = vmul.f32 %v422, %v168
          %s424 = sadd.s32 %s401, 4
          %s425 = smul.u32 %s424, 128
          %s426 = sadd.s32 %s425, %s406
          %s427 = sld [smem:[#allocation5 + %s426]]
          %v428 = vstv %s427
          %v429 = vmul.f32 %v428, %v171
          %v430 = vadd.f32 %v423, %v429
          %s431 = sadd.s32 %s401, 5
          %s432 = smul.u32 %s431, 128
          %s433 = sadd.s32 %s432, %s406
          %s434 = sld [smem:[#allocation5 + %s433]]
          %v435 = vstv %s434
          %v436 = vadd.f32 %v430, %v435
          %v437 = vmin.f32 %v417, %v436
          %v438 = vadd.f32 %v417, %v436
          %v439 = vsub.f32 1.0, %v438
          %v440 = vmin.f32 %v437, %v439
          %vm441 = vcmp.ge.f32.partialorder %v440, 0.0
          %v442 = vsel %vm441, %v417, %v389
          %v443 = vsel %vm441, %v436, %v390
          %s444 = sadd.s32 %s401, 6
          %s445 = smul.u32 %s444, 128
          %s446 = sadd.s32 %s445, %s406
          %s447 = sld [smem:[#allocation5 + %s446]]
          %v448 = vstv %s447
          %v449 = vsel %vm441, %v448, %v396
          %s450 = sadd.s32 %s184, 2
          %s451 = sld [smem:[#allocation5 + %s450]]
          %v452 = vstv %s451
          %v453 = vmul.f32 %v452, %v168
          %s454 = sshra.s32 %s450, 7
          %s455 = sand.u32 %s450, 127
          %s456 = sadd.s32 %s454, 1
          %s457 = smul.u32 %s456, 128
          %s458 = sshra.s32 %s450, 7
          %s459 = sand.u32 %s450, 127
          %s460 = sadd.s32 %s457, %s459
          %s461 = sld [smem:[#allocation5 + %s460]]
          %v462 = vstv %s461
          %v463 = vmul.f32 %v462, %v171
          %v464 = vadd.f32 %v453, %v463
          %s465 = sadd.s32 %s454, 2
          %s466 = smul.u32 %s465, 128
          %s467 = sadd.s32 %s466, %s459
          %s468 = sld [smem:[#allocation5 + %s467]]
          %v469 = vstv %s468
          %v470 = vadd.f32 %v464, %v469
          %s471 = sadd.s32 %s454, 3
          %s472 = smul.u32 %s471, 128
          %s473 = sadd.s32 %s472, %s459
          %s474 = sld [smem:[#allocation5 + %s473]]
          %v475 = vstv %s474
          %v476 = vmul.f32 %v475, %v168
          %s477 = sadd.s32 %s454, 4
          %s478 = smul.u32 %s477, 128
          %s479 = sadd.s32 %s478, %s459
          %s480 = sld [smem:[#allocation5 + %s479]]
          %v481 = vstv %s480
          %v482 = vmul.f32 %v481, %v171
          %v483 = vadd.f32 %v476, %v482
          %s484 = sadd.s32 %s454, 5
          %s485 = smul.u32 %s484, 128
          %s486 = sadd.s32 %s485, %s459
          %s487 = sld [smem:[#allocation5 + %s486]]
          %v488 = vstv %s487
          %v489 = vadd.f32 %v483, %v488
          %v490 = vmin.f32 %v470, %v489
          %v491 = vadd.f32 %v470, %v489
          %v492 = vsub.f32 1.0, %v491
          %v493 = vmin.f32 %v490, %v492
          %vm494 = vcmp.ge.f32.partialorder %v493, 0.0
          %v495 = vsel %vm494, %v470, %v442
          %v496 = vsel %vm494, %v489, %v443
          %s497 = sadd.s32 %s454, 6
          %s498 = smul.u32 %s497, 128
          %s499 = sadd.s32 %s498, %s459
          %s500 = sld [smem:[#allocation5 + %s499]]
          %v501 = vstv %s500
          %v502 = vsel %vm494, %v501, %v449
          %s503 = sadd.s32 %s184, 1
          %s504 = sld [smem:[#allocation5 + %s503]]
          %v505 = vstv %s504
          %v506 = vmul.f32 %v505, %v168
          %s507 = sshra.s32 %s503, 7
          %s508 = sand.u32 %s503, 127
          %s509 = sadd.s32 %s507, 1
          %s510 = smul.u32 %s509, 128
          %s511 = sshra.s32 %s503, 7
          %s512 = sand.u32 %s503, 127
          %s513 = sadd.s32 %s510, %s512
          %s514 = sld [smem:[#allocation5 + %s513]]
          %v515 = vstv %s514
          %v516 = vmul.f32 %v515, %v171
          %v517 = vadd.f32 %v506, %v516
          %s518 = sadd.s32 %s507, 2
          %s519 = smul.u32 %s518, 128
          %s520 = sadd.s32 %s519, %s512
          %s521 = sld [smem:[#allocation5 + %s520]]
          %v522 = vstv %s521
          %v523 = vadd.f32 %v517, %v522
          %s524 = sadd.s32 %s507, 3
          %s525 = smul.u32 %s524, 128
          %s526 = sadd.s32 %s525, %s512
          %s527 = sld [smem:[#allocation5 + %s526]]
          %v528 = vstv %s527
          %v529 = vmul.f32 %v528, %v168
          %s530 = sadd.s32 %s507, 4
          %s531 = smul.u32 %s530, 128
          %s532 = sadd.s32 %s531, %s512
          %s533 = sld [smem:[#allocation5 + %s532]]
          %v534 = vstv %s533
          %v535 = vmul.f32 %v534, %v171
          %v536 = vadd.f32 %v529, %v535
          %s537 = sadd.s32 %s507, 5
          %s538 = smul.u32 %s537, 128
          %s539 = sadd.s32 %s538, %s512
          %s540 = sld [smem:[#allocation5 + %s539]]
          %v541 = vstv %s540
          %v542 = vadd.f32 %v536, %v541
          %v543 = vmin.f32 %v523, %v542
          %v544 = vadd.f32 %v523, %v542
          %v545 = vsub.f32 1.0, %v544
          %v546 = vmin.f32 %v543, %v545
          %vm547 = vcmp.ge.f32.partialorder %v546, 0.0
          %v548 = vsel %vm547, %v523, %v495
          %v549 = vsel %vm547, %v542, %v496
          %s550 = sadd.s32 %s507, 6
          %s551 = smul.u32 %s550, 128
          %s552 = sadd.s32 %s551, %s512
          %s553 = sld [smem:[#allocation5 + %s552]]
          %v554 = vstv %s553
          %v555 = vsel %vm547, %v554, %v502
          %s556 = sld [smem:[#allocation5 + %s184]]
          %v557 = vstv %s556
          %v558 = vmul.f32 %v557, %v168
          %s559 = sshra.s32 %s184, 7
          %s560 = sand.u32 %s184, 127
          %s561 = sadd.s32 %s559, 1
          %s562 = smul.u32 %s561, 128
          %s563 = sshra.s32 %s184, 7
          %s564 = sand.u32 %s184, 127
          %s565 = sadd.s32 %s562, %s564
          %s566 = sld [smem:[#allocation5 + %s565]]
          %v567 = vstv %s566
          %v568 = vmul.f32 %v567, %v171
          %v569 = vadd.f32 %v558, %v568
          %s570 = sadd.s32 %s559, 2
          %s571 = smul.u32 %s570, 128
          %s572 = sadd.s32 %s571, %s564
          %s573 = sld [smem:[#allocation5 + %s572]]
          %v574 = vstv %s573
          %v575 = vadd.f32 %v569, %v574
          %s576 = sadd.s32 %s559, 3
          %s577 = smul.u32 %s576, 128
          %s578 = sadd.s32 %s577, %s564
          %s579 = sld [smem:[#allocation5 + %s578]]
          %v580 = vstv %s579
          %v581 = vmul.f32 %v580, %v168
          %s582 = sadd.s32 %s559, 4
          %s583 = smul.u32 %s582, 128
          %s584 = sadd.s32 %s583, %s564
          %s585 = sld [smem:[#allocation5 + %s584]]
          %v586 = vstv %s585
          %v587 = vmul.f32 %v586, %v171
          %v588 = vadd.f32 %v581, %v587
          %s589 = sadd.s32 %s559, 5
          %s590 = smul.u32 %s589, 128
          %s591 = sadd.s32 %s590, %s564
          %s592 = sld [smem:[#allocation5 + %s591]]
          %v593 = vstv %s592
          %v594 = vadd.f32 %v588, %v593
          %v595 = vmin.f32 %v575, %v594
          %v596 = vadd.f32 %v575, %v594
          %v597 = vsub.f32 1.0, %v596
          %v598 = vmin.f32 %v595, %v597
          %vm599 = vcmp.ge.f32.partialorder %v598, 0.0
          %v600 = vsel %vm599, %v575, %v548
          %v601 = vsel %vm599, %v594, %v549
          %s602 = sadd.s32 %s559, 6
          %s603 = smul.u32 %s602, 128
          %s604 = sadd.s32 %s603, %s564
          %s605 = sld [smem:[#allocation5 + %s604]]
          %v606 = vstv %s605
          %v607 = vsel %vm599, %v606, %v555
        $region41: #{tpu_custom_call.1} parent=27 // loop_footer
          %s175 = sadd.s32 %s173, 1
        $region42: #{tpu_custom_call.1} parent=27 // loop_footer_branch
          %172 = sbr.rel target = $region38
        $region43: #{tpu_custom_call.1} parent=27 // loop_exit
          _
        %vm608 = vcmp.ge.f32.partialorder %v180, 0.0
        %v609 = vadd.f32 %v178, %v179
        %v610 = vsub.f32 1.0, %v609
        %v611 = vsel %vm608, %v610, 0.0
        %vm612 = vcmask 130048
        %613 = vst.msk [vmem:[%s148] sm:$0xff] %vm612, %v611
        %s614 = scalar_lea.vmem %s148, 8 [#allocation7]
        %615 = vst.msk [vmem:[%s614] sm:$0xff] %vm612, %v178
        %s616 = scalar_lea.vmem %s148, 16 [#allocation7]
        %617 = vst.msk [vmem:[%s616] sm:$0xff] %vm612, %v179
        %s618 = scalar_lea.vmem %s148, 24 [#allocation7]
        %619 = vst.msk [vmem:[%s618] sm:$0xff] %vm612, %v180
        %s620 = sand.u32 %s68, 1
        %s621 = scalar_lea.sflag [#allocation3], %s620
        %s622 = sand.u32 %s68, 1
        %s623 = smul.addr %s622, 32
        %s624 = scalar_lea.vmem [#allocation7], %s623
        // Predicated region
        $region44: #{tpu_custom_call.1} parent=27 // pred_check
          %p625 = pneg %p78
        $region45: #{tpu_custom_call.1} parent=27 // pred_check_branch
          %627 = sbr.rel (%p625) target = $region47
        $region46: #{tpu_custom_call.1} parent=27 // pred_region
          %629 = vsyncadd %s621, 0
          %s630 = smul.addr %s18, 8
          %s631 = scalar_lea.hbm %s2, %s630
          %s632 = sshll.u32 %s624, 4
          %s633 = int_to_ptr.vmem [resolvable:$true] %s632
          %s634 = sshll.u32 %s631, 4
          %s635 = int_to_ptr.hbm [resolvable:$true] %s634
          %640 = dma.vmem_to_hbm [thread:$0]  %s633, 512, %s635, %s621, 128, 256, 8
        $region47: #{tpu_custom_call.1} parent=27 // pred_fallthru
          _
      $region28: #{tpu_custom_call.1} parent=5 // pred_fallthru
        _
      %p641 = scmp.le.s32.totalorder 2, %s13
      // Predicated region
      $region48: #{tpu_custom_call.1} parent=5 // pred_check
        %p642 = pneg %p641
      $region49: #{tpu_custom_call.1} parent=5 // pred_check_branch
        %644 = sbr.rel (%p642) target = $region51
      $region50: #{tpu_custom_call.1} parent=5 // pred_region
        %s645 = ssub.s32 %s13, 2
        // Predicated region
        $region52: #{tpu_custom_call.1} parent=50 // pred_check
          %p646 = pneg %p84
        $region53: #{tpu_custom_call.1} parent=50 // pred_check_branch
          %648 = sbr.rel (%p646) target = $region55
        $region54: #{tpu_custom_call.1} parent=50 // pred_region
          %s649 = sand.u32 %s69, 1
          %s650 = scalar_lea.sflag [#allocation3], %s649
          %s651 = sand.u32 %s69, 1
          %s652 = smul.addr %s651, 32
          %s653 = scalar_lea.vmem [#allocation7], %s652
          %655 = dma.done %s650, 512
        $region55: #{tpu_custom_call.1} parent=50 // pred_fallthru
          _
      $region51: #{tpu_custom_call.1} parent=5 // pred_fallthru
        _
    $region6: #{tpu_custom_call.1} parent=1 // loop_footer
      %s17 = sadd.s32 1, %s13
    $region7: #{tpu_custom_call.1} parent=1 // loop_footer_branch
      %12 = sbr.rel target = $region3
    $region8: #{tpu_custom_call.1} parent=1 // loop_exit
      _
    %656 = vsyncpa [#allocation3], 1
    %s657 = scalar_lea.sflag [#allocation3], 1
    %658 = vsyncpa %s657, 1
    %659 = vsyncpa [#allocation4], 1
    %s660 = scalar_lea.sflag [#allocation4], 1
    %661 = vsyncpa %s660, 1
    %662 = vsyncpa [#allocation6], 1

</llo_original>
